<compile_context>
chip_gen: v7x
topology: tpu7x:2x2x1
jax: 0.10.0
libtpu: 0.0.40
codegen_flags: <defaults>
</compile_context>

<pallas_src>
import functools

import jax
import jax.numpy as jnp
from jax.experimental import pallas as pl
from jax.experimental.pallas import tpu as pltpu

LANE = 128


def _round_up(x, m):
    return -(-x // m) * m


def _tpu_defaults():
    """Best-effort chip detection -> (core split, per-block byte budget)."""
    kind = ""
    try:
        for d in jax.devices():
            if d.platform == "tpu":
                kind = str(getattr(d, "device_kind", "")).lower()
                break
    except Exception:
        pass
    # Two TensorCores per chip only on v7x among the targeted generations.
    ncores = 2 if "v7" in kind else 1
    # HBM-streaming block budget (per input block; Pallas double-buffers it):
    #   v7x      : 3.2 TB/s per TC -> 4 MiB blocks (8 MiB buffered << 32 MiB scope)
    #   v5e/v6e  : 2 MiB blocks already ~85%+ of HBM roofline, safe in 16 MiB scope
    block_bytes = 4 * 1024 * 1024 if "v7" in kind else 2 * 1024 * 1024
    return ncores, block_bytes


def _partial_sum_kernel(vals_ref, out_ref, acc_ref, *, rows, tile_rows,
                        chunk_rows, blocks_per_core, needs_mask, unroll):
    """Stream one (tile_rows, LANE) block of values into a per-core
    (chunk_rows, LANE) f32 VMEM accumulator; on this core's last block,
    sublane-reduce the accumulator and emit a lane-dense (1, LANE) partial."""
    c = pl.program_id(0)          # core-split index        ("parallel")
    k = pl.program_id(1)          # block index on this core ("arbitrary")

    @pl.when(k == 0)
    def _init():
        acc_ref[...] = jnp.zeros_like(acc_ref)

    logical_block = c * blocks_per_core + k
    n_chunks = tile_rows // chunk_rows
    n_full_blocks = rows // tile_rows        # blocks fully inside valid rows
    eff_unroll = max(1, min(unroll, n_chunks))

    def accumulate(apply_mask):
        def body(j, acc):
            start = pl.multiple_of(j * chunk_rows, chunk_rows)
            chunk = vals_ref[pl.ds(start, chunk_rows), :].astype(jnp.float32)
            if apply_mask:
                row0 = logical_block * tile_rows + start
                rid = jax.lax.broadcasted_iota(
                    jnp.int32, (chunk_rows, 1), 0) + row0
                chunk = jnp.where(rid < rows, chunk, jnp.float32(0.0))
            return acc + chunk
        # Keep the accumulator vreg-resident across chunks; bounded unroll so
        # large tiles do not spill (per-iter loop overhead hides under HBM).
        acc_ref[...] = jax.lax.fori_loop(0, n_chunks, body, acc_ref[...],
                                         unroll=eff_unroll)

    if needs_mask:
        is_full = logical_block < n_full_blocks

        @pl.when(is_full)
        def _full_block():            # interior block: unmasked fast path
            accumulate(False)

        @pl.when(jnp.logical_not(is_full))
        def _edge_block():            # ragged / duplicated block: row-masked
            accumulate(True)
    else:
        accumulate(False)

    @pl.when(k == blocks_per_core - 1)
    def _finalize():                  # fused finalization: one row per core
        out_ref[...] = jnp.sum(acc_ref[...], axis=0, keepdims=True)


def running_mean_variance_update(values, step, running_mean, running_estimate_p,
                                 *, time_dilate_factor=1.0, block_bytes=None,
                                 ncores=None):
    """Functional forward of RunningMeanVariance.

    Returns (new_running_mean, new_running_estimate_p, new_step).
    Note: like the torch module, step must be > 0 (step == 0 divides by zero).
    """
    total = int(values.size)
    itemsize = jnp.dtype(values.dtype).itemsize
    flat = values.reshape(-1)                     # native dtype, no f32 cast

    auto_ncores, auto_bytes = _tpu_defaults()
    ncores = auto_ncores if ncores is None else int(ncores)
    block_bytes = auto_bytes if block_bytes is None else int(block_bytes)

    rows = total // LANE
    rem = total - rows * LANE

    if rows == 0:
        # Fewer than 128 elements: a grid kernel buys nothing; this tiny sum
        # fuses into the scalar-update XLA kernel below.
        total_sum = jnp.sum(flat.astype(jnp.float32))
    else:
        # 128-aligned prefix goes through the kernel in its native dtype; the
        # <128-element ragged tail is summed in the wrapper (no jnp.pad copy).
        main = flat if rem == 0 else flat[: rows * LANE]
        slab = main.reshape(rows, LANE)

        # Sublane granularity for the native dtype (8 f32 / 16 bf16 / 32 int8).
        sub = 8 * max(1, 4 // max(1, itemsize))
        rows_up = _round_up(rows, sub)
        chunk_rows = min(128, rows_up)            # accumulator rows / VPU chunk

        # Rows per grid step from the byte budget (amortizes ~0.35us/step).
        target_rows = max(chunk_rows, block_bytes // (LANE * itemsize))
        eff_tile = min(_round_up(target_rows, chunk_rows),
                       _round_up(rows_up, chunk_rows))
        blocks_total = pl.cdiv(rows, eff_tile)
        blocks_per_core = pl.cdiv(blocks_total, ncores)
        needs_mask = (rows % eff_tile != 0) or (
            blocks_per_core * ncores != blocks_total)

        def vals_index_map(c, k):
            # Clamp so duplicated trailing blocks of the core split never DMA
            # out of bounds; their rows are masked to zero inside the kernel.
            return (jnp.minimum(c * blocks_per_core + k, blocks_total - 1), 0)

        kernel = functools.partial(
            _partial_sum_kernel, rows=rows, tile_rows=eff_tile,
            chunk_rows=chunk_rows, blocks_per_core=blocks_per_core,
            needs_mask=needs_mask, unroll=2)

        partials = pl.pallas_call(
            kernel,
            out_shape=jax.ShapeDtypeStruct((ncores, 1, LANE), jnp.float32),
            grid=(ncores, blocks_per_core),
            in_specs=[pl.BlockSpec((eff_tile, LANE), vals_index_map)],
            out_specs=pl.BlockSpec((None, 1, LANE), lambda c, k: (c, 0, 0)),
            scratch_shapes=[pltpu.VMEM((chunk_rows, LANE), jnp.float32)],
            compiler_params=pltpu.CompilerParams(
                dimension_semantics=("parallel", "arbitrary")),
            cost_estimate=pl.CostEstimate(
                flops=total, transcendentals=0,
                bytes_accessed=rows * LANE * itemsize + ncores * LANE * 4),
        )(slab)

        total_sum = jnp.sum(partials)
        if rem:
            total_sum = total_sum + jnp.sum(
                flat[rows * LANE:].astype(jnp.float32))

    # O(1) scalar Welford-style update (identical ops to the torch forward).
    # TODO(synk): torch does `time = self.time.item()` (host sync); here `time`
    # stays a traced f32 scalar, which is numerically identical.
    new_mean = total_sum / jnp.float32(total)
    time = step.astype(jnp.float32) / jnp.float32(time_dilate_factor)
    mean = running_mean.astype(jnp.float32)
    p = running_estimate_p.astype(jnp.float32)
    delta = new_mean - mean
    mean = mean + delta / time
    p = p + (new_mean - mean) * delta
    return mean, p, step + jnp.int32(1)


def _reference(values, step, running_mean, running_estimate_p, time_dilate_factor):
    """Pure-JAX mirror of the PyTorch forward."""
    time = jnp.float32(step) / jnp.float32(time_dilate_factor)
    new_mean = jnp.mean(values.astype(jnp.float32))
    delta = new_mean - running_mean
    mean = running_mean + delta / time
    p = running_estimate_p + (new_mean - mean) * delta
    return mean, p, step + 1


if __name__ == "__main__":
    key = jax.random.PRNGKey(0)

    # (shape, dtype, step, time_dilate_factor, overrides)
    cases = [
        ((2, 4, 16, 16), jnp.float32, 3, 1.0, {}),            # single block, auto config
        ((2, 4, 64, 64), jnp.float32, 4, 2.0,
         dict(block_bytes=64 * 1024, ncores=2)),              # 2 full blocks over 2 core slots
        ((2, 4, 60, 64), jnp.bfloat16, 5, 1.0,
         dict(block_bytes=32 * 1024)),                        # bf16, ragged row tail (masked edge block)
        ((2, 3, 7, 5), jnp.float32, 4, 1.0, {}),              # numel % 128 != 0 (wrapper tail sum)
        ((8, 16), jnp.float32, 2, 1.0, dict(ncores=2)),       # 1 block; duplicate core slot fully masked
    ]

    for idx, (shape, dtype, step_val, tdf, kw) in enumerate(cases):
        key, sub = jax.random.split(key)
        x = (jax.random.normal(sub, shape, dtype=jnp.float32) * 3.0 + 7.0).astype(dtype)

        step = jnp.int32(step_val)
        running_mean = jnp.float32(100.0)
        running_p = jnp.float32(1.0)

        new_mean, new_p, new_step = running_mean_variance_update(
            x, step, running_mean, running_p, time_dilate_factor=tdf, **kw)
        jax.block_until_ready((new_mean, new_p, new_step))

        ref_mean, ref_p, ref_step = _reference(x, step, running_mean, running_p, tdf)

        # Kernel and reference only differ in f32 summation order of new_mean;
        # p's update term (new_mean - updated_mean) * delta amplifies that tiny
        # difference by ~|delta|, so p gets a looser tolerance.
        assert jnp.allclose(new_mean, ref_mean, rtol=1e-5, atol=1e-3), (
            idx, new_mean, ref_mean)
        assert jnp.allclose(new_p, ref_p, rtol=1e-4, atol=1e-2), (
            idx, new_p, ref_p)
        assert int(new_step) == int(ref_step), (idx, new_step, ref_step)

    print("KERNEL_OK")
</pallas_src>

<mosaic_0001>
module attributes {stable_mosaic.version = 11 : i64} {
  func.func @_partial_sum_kernel(%arg0: i32, %arg1: i32, %arg2: memref<16x128xf32, #tpu.memory_space<vmem>>, %arg3: memref<1x1x128xf32, #tpu.memory_space<vmem>>, %arg4: memref<16x128xf32, #tpu.memory_space<vmem>>) attributes {dimension_semantics = [#tpu.dimension_semantics<parallel>, #tpu.dimension_semantics<arbitrary>], iteration_bounds = array<i64: 1, 1>, scalar_prefetch = 0 : i64, scratch_operands = 1 : i64, tpu.core_type = #tpu.core_type<tc>, window_params = [{transform_indices = @transform_0, window_bounds = array<i64: 16, 128>}, {transform_indices = @transform_1, window_bounds = array<i64: 1, 1, 128>}]} {
    %c0_i32 = arith.constant 0 : i32
    %0 = arith.cmpi eq, %arg1, %c0_i32 : i32
    %1 = arith.extui %0 : i1 to i32
    %c0_i32_0 = arith.constant 0 : i32
    %2 = arith.cmpi ne, %1, %c0_i32_0 : i32
    scf.if %2 {
      %cst = arith.constant 0.000000e+00 : f32
      %13 = vector.broadcast %cst : f32 to vector<16x128xf32>
      %c0_8 = arith.constant 0 : index
      %c0_9 = arith.constant 0 : index
      %14 = vector.load %arg4[%c0_8, %c0_9] : memref<16x128xf32, #tpu.memory_space<vmem>>, vector<16x128xf32>
      tpu.vector_store %arg4[%c0_8, %c0_9], %13 {strides = array<i32>} : memref<16x128xf32, #tpu.memory_space<vmem>>, vector<16x128xf32>,
    } else {
    }
    %c0 = arith.constant 0 : index
    %c0_1 = arith.constant 0 : index
    %3 = vector.load %arg4[%c0, %c0_1] : memref<16x128xf32, #tpu.memory_space<vmem>>, vector<16x128xf32>
    %c0_i32_2 = arith.constant 0 : i32
    %c16_i32 = arith.constant 16 : i32
    %4 = arith.muli %c0_i32_2, %c16_i32 : i32
    %5 = tpu.assume_multiple %4, 16 : i32
    %6 = arith.index_cast %5 : i32 to index
    %c0_3 = arith.constant 0 : index
    %7 = vector.load %arg2[%6, %c0_3] : memref<16x128xf32, #tpu.memory_space<vmem>>, vector<16x128xf32>
    %8 = arith.addf %3, %7 : vector<16x128xf32>
    %c1_i32 = arith.constant 1 : i32
    %c0_4 = arith.constant 0 : index
    %c0_5 = arith.constant 0 : index
    %9 = vector.load %arg4[%c0_4, %c0_5] : memref<16x128xf32, #tpu.memory_space<vmem>>, vector<16x128xf32>
    tpu.vector_store %arg4[%c0_4, %c0_5], %8 {strides = array<i32>} : memref<16x128xf32, #tpu.memory_space<vmem>>, vector<16x128xf32>,
    %c0_i32_6 = arith.constant 0 : i32
    %10 = arith.cmpi eq, %arg1, %c0_i32_6 : i32
    %11 = arith.extui %10 : i1 to i32
    %c0_i32_7 = arith.constant 0 : i32
    %12 = arith.cmpi ne, %11, %c0_i32_7 : i32
    scf.if %12 {
      %c0_8 = arith.constant 0 : index
      %c0_9 = arith.constant 0 : index
      %13 = vector.load %arg4[%c0_8, %c0_9] : memref<16x128xf32, #tpu.memory_space<vmem>>, vector<16x128xf32>
      %cst = arith.constant dense<0.000000e+00> : vector<128xf32>
      %14 = vector.multi_reduction <add>, %13, %cst [0] : vector<16x128xf32> to vector<128xf32>
      %15 = vector.shape_cast %14 : vector<128xf32> to vector<1x128xf32>
      %c0_10 = arith.constant 0 : index
      %c0_11 = arith.constant 0 : index
      %c0_12 = arith.constant 0 : index
      %16 = vector.load %arg3[%c0_10, %c0_11, %c0_12] : memref<1x1x128xf32, #tpu.memory_space<vmem>>, vector<1x1x128xf32>
      %17 = vector.shape_cast %16 : vector<1x1x128xf32> to vector<1x128xf32>
      %18 = vector.shape_cast %15 : vector<1x128xf32> to vector<1x1x128xf32>
      tpu.vector_store %arg3[%c0_10, %c0_11, %c0_12], %18 {strides = array<i32>} : memref<1x1x128xf32, #tpu.memory_space<vmem>>, vector<1x1x128xf32>,
    } else {
    }
    return
  }
  func.func @transform_0(%arg0: i32, %arg1: i32) -> (i32, i32) {
    %c1_i32 = arith.constant 1 : i32
    %0 = arith.muli %arg0, %c1_i32 : i32
    %1 = arith.addi %0, %arg1 : i32
    %c0_i32 = arith.constant 0 : i32
    %2 = arith.minsi %1, %c0_i32 : i32
    %c0_i32_0 = arith.constant 0 : i32
    %c0_i32_1 = arith.constant 0 : i32
    return %2, %c0_i32_0 : i32, i32
  }
  func.func @transform_1(%arg0: i32, %arg1: i32) -> (i32, i32, i32) {
    %c0_i32 = arith.constant 0 : i32
    %c0_i32_0 = arith.constant 0 : i32
    %c0_i32_1 = arith.constant 0 : i32
    return %arg0, %c0_i32, %c0_i32_0 : i32, i32, i32
  }
}

</mosaic_0001>

<llo_original>
// kernel: tpu_custom_call.1
$region0: #{tpu_custom_call.1}
  #allocation0 [shape = 'u32[]', space=smem, size = 0x4, offset = 0x4, fixed_abs, tag = 'smem constant byte address 0x4 - core index']
  #allocation1 [shape = 'u32[144,128]{1,0:T(1,128)}', space=vmem, size = 0x12000, scoped, tag = 'internal scratch']
  #allocation2 [shape = 'f32[16,128]{1,0:T(8,128)}', space=vmem, size = 0x2000, scoped, tag = 'scratch operand']
  %s0 = inlined_call_operand.hbm [shape: f32[16,128], index: 0, kind: input, shape index: {}]
  %s1 = inlined_call_operand.hbm [shape: f32[1,1,128], index: 1, kind: output, shape index: {}]
  %s2 = sld [smem:[#allocation0]]
  $region26: #{tpu_custom_call.1} parent=0
    _
  %s4 = ssub.s32 1, %s2
  %s5 = scalar_select 0, %s4, %s2
  $region1: #{tpu_custom_call.1} parent=0
    #allocation3 [shape = 'u8[8192]{0}', space=vmem, size = 0x2000, scoped, tag = 'input window, operand 0, single buffered']
    #allocation4 [shape = 's32[1]{0}', space=sflag, size = 0x4, scoped, tag = 'scoped memory for tpu_custom_call.1']
    #allocation5 [shape = 's32[1]{0}', space=sflag, size = 0x4, scoped, tag = 'scoped memory for tpu_custom_call.1']
    #allocation6 [shape = 'u8[512]{0}', space=vmem, size = 0x400, scoped, tag = 'output window, operand 0, single buffered']
    %6 = vsyncpa [#allocation4], 0
    %7 = vsyncpa [#allocation5], 0
    // Predicated region
    $region2: #{tpu_custom_call.1} parent=1 // pred_check
      _
    $region3: #{tpu_custom_call.1} parent=1 // pred_check_branch
      %9 = sbr.rel (0) target = $region5
    $region4: #{tpu_custom_call.1} parent=1 // pred_region
      %s10 = sadd.s32 0, 0
      %p11 = scmp.lt.s32.totalorder %s10, 0
      %s12 = scalar_select %p11, %s10, 0
      %s13 = smul.u32 2, %s12
      %s15 = ssub.s32 256, 256
      %16 = vsyncadd [#allocation4], %s15
      %s17 = smul.addr %s13, 128
      %s18 = scalar_lea.hbm %s0, %s17
      %s19 = sshll.u32 [#allocation3], 4
      %s20 = int_to_ptr.vmem [resolvable:$true] %s19
      %25 = dma.hbm_to_vmem [thread:$0]  %s18, 256, %s20, [#allocation4], 128, 128, 8
    $region5: #{tpu_custom_call.1} parent=1 // pred_fallthru
      _
    // Predicated region
    $region6: #{tpu_custom_call.1} parent=1 // pred_check
      _
    $region7: #{tpu_custom_call.1} parent=1 // pred_check_branch
      %27 = sbr.rel (0) target = $region9
    $region8: #{tpu_custom_call.1} parent=1 // pred_region
      %28 = dma.done [#allocation4], 256
    $region9: #{tpu_custom_call.1} parent=1 // pred_fallthru
      _
    %s29 = sadd.s32 0, 0
    %p30 = scmp.lt.s32.totalorder %s29, 0
    %s31 = scalar_select %p30, %s29, 0
    %s32 = smul.u32 2, %s31
    %p33 = scmp.eq.s32.totalorder 0, 0
    // Predicated region
    $region10: #{tpu_custom_call.1} parent=1 // pred_check
      %p34 = pneg %p33
    $region11: #{tpu_custom_call.1} parent=1 // pred_check_branch
      %36 = sbr.rel (%p34) target = $region13
    $region12: #{tpu_custom_call.1} parent=1 // pred_region
      %37 = vst [vmem:[#allocation2] sm:$0xff] 0.0
      %38 = vst [vmem:[#allocation2 + $0x8] sm:$0xff] 0.0
    $region13: #{tpu_custom_call.1} parent=1 // pred_fallthru
      _
    %v39 = vld [vmem:[#allocation2] sm:$0xff]
    %v40 = vld [vmem:[#allocation2 + $0x8] sm:$0xff]
    %v41 = vld [vmem:[#allocation3] sm:$0xff]
    %v42 = vld [vmem:[#allocation3 + $0x8] sm:$0xff]
    %v43 = vadd.f32 %v39, %v41
    %v44 = vadd.f32 %v40, %v42
    %45 = vst [vmem:[#allocation2] sm:$0xff] %v43
    %46 = vst [vmem:[#allocation2 + $0x8] sm:$0xff] %v44
    // Predicated region
    $region14: #{tpu_custom_call.1} parent=1 // pred_check
      %p47 = pneg %p33
    $region15: #{tpu_custom_call.1} parent=1 // pred_check_branch
      %49 = sbr.rel (%p47) target = $region17
    $region16: #{tpu_custom_call.1} parent=1 // pred_region
      %v50 = vld [vmem:[#allocation2] sm:$0xff]
      %v51 = vld [vmem:[#allocation2 + $0x8] sm:$0xff]
      %v52 = vadd.f32 %v50, %v51
      %v53 = vrot.slane %v52, 4
      %v54 = vadd.f32 %v52, %v53
      %v55 = vrot.slane %v54, 2
      %v56 = vadd.f32 %v54, %v55
      %v57 = vrot.slane %v56, 1
      %v58 = vadd.f32 %v56, %v57
      %59 = vst [vmem:[#allocation6] sm:$0x1] %v58
    $region17: #{tpu_custom_call.1} parent=1 // pred_fallthru
      _
    // Predicated region
    $region18: #{tpu_custom_call.1} parent=1 // pred_check
      _
    $region19: #{tpu_custom_call.1} parent=1 // pred_check_branch
      %61 = sbr.rel (0) target = $region21
    $region20: #{tpu_custom_call.1} parent=1 // pred_region
      %s63 = ssub.s32 16, 16
      %64 = vsyncadd [#allocation5], %s63
      %s66 = sshll.u32 [#allocation6], 4
      %s67 = int_to_ptr.vmem [resolvable:$true] %s66
      %69 = dma.vmem_to_hbm [thread:$0]  %s67, 16, %s1, [#allocation5]
    $region21: #{tpu_custom_call.1} parent=1 // pred_fallthru
      _
    // Predicated region
    $region22: #{tpu_custom_call.1} parent=1 // pred_check
      _
    $region23: #{tpu_custom_call.1} parent=1 // pred_check_branch
      %71 = sbr.rel (0) target = $region25
    $region24: #{tpu_custom_call.1} parent=1 // pred_region
      %72 = dma.done [#allocation5], 16
    $region25: #{tpu_custom_call.1} parent=1 // pred_fallthru
      _
    %73 = vsyncpa [#allocation4], 1
    %74 = vsyncpa [#allocation5], 1

</llo_original>
